<compile_context>
chip_gen: v7x
topology: tpu7x:2x2x1
jax: 0.10.0
libtpu: 0.0.40
codegen_flags: <defaults>
</compile_context>

<pallas_src>
import functools

import jax
import jax.numpy as jnp
from jax.experimental import pallas as pl
from jax.experimental.pallas import tpu as pltpu

LANE = 128
MAX_BLOCK_ROWS = 1024      # (1024, 128) f32 block = 512 KiB per input buffer
NEG_LOGIT = -1e9           # sigmoid(-1e9) == 0 and log1p(exp(-1e9)) == 0 in f32


def _round_up(a, b):
    return (a + b - 1) // b * b


def _dice_bce_kernel(x_ref, t_ref, out_ref, acc_ref, *,
                     tm, inner_steps, rows, needs_mask):
    """Accumulates partial sums of (p*t, p, t, BCE) over the inner grid axis;
    writes the 4 partials for this parallel chunk on the last inner step."""
    p_id = pl.program_id(0)   # parallel (megacore) axis
    i_id = pl.program_id(1)   # sequential reduction axis

    @pl.when(i_id == 0)
    def _():
        acc_ref[0] = 0.0
        acc_ref[1] = 0.0
        acc_ref[2] = 0.0
        acc_ref[3] = 0.0

    x = x_ref[...].astype(jnp.float32)   # logits tile
    t = t_ref[...].astype(jnp.float32)   # targets tile

    if needs_mask:
        # Rows beyond the real array (ragged last block / clamped overflow
        # blocks) are replaced with values contributing exactly zero.
        row_start = (p_id * inner_steps + i_id) * tm
        row_ids = row_start + jax.lax.broadcasted_iota(jnp.int32, x.shape, 0)
        valid = row_ids < rows
        x = jnp.where(valid, x, NEG_LOGIT)
        t = jnp.where(valid, t, 0.0)

    # Shared transcendental: e = exp(-|x|) serves both sigmoid and stable BCE.
    e = jnp.exp(-jnp.abs(x))
    p = jnp.where(x >= 0, 1.0, e) / (1.0 + e)            # == sigmoid(x), exact
    # -(t*log(p) + (1-t)*log(1-p)) == max(x,0) - x*t + log1p(exp(-|x|))
    bce = jnp.maximum(x, 0.0) - x * t + jnp.log1p(e)

    acc_ref[0] += jnp.sum(p * t)
    acc_ref[1] += jnp.sum(p)
    acc_ref[2] += jnp.sum(t)
    acc_ref[3] += jnp.sum(bce)

    @pl.when(i_id == inner_steps - 1)
    def _():
        out_ref[0, 0] = acc_ref[0]
        out_ref[0, 1] = acc_ref[1]
        out_ref[0, 2] = acc_ref[2]
        out_ref[0, 3] = acc_ref[3]


def dice_bce_loss(logits, targets, smooth=1.0):
    x = logits.reshape(-1)      # keep HBM dtype (bf16 stays bf16)
    t = targets.reshape(-1)
    n = x.shape[0]

    # Minimum tile granularity (sub, 128); sub depends on dtype packing.
    def _sub(dt):
        return 8 if dt.itemsize >= 4 else (16 if dt.itemsize == 2 else 32)
    sub = max(_sub(x.dtype), _sub(t.dtype))

    tile = sub * LANE
    n_pad = _round_up(n, tile)
    pad = n_pad - n
    if pad:
        # Only for ragged sizes.  Padded logits -> -1e9 and targets -> 0
        # contribute exactly zero, so no mask array is ever streamed.
        x = jnp.pad(x, (0, pad), constant_values=NEG_LOGIT)
        t = jnp.pad(t, (0, pad), constant_values=0)

    rows = n_pad // LANE
    x2 = x.reshape(rows, LANE)
    t2 = t.reshape(rows, LANE)

    tm = min(MAX_BLOCK_ROWS, rows)                # rows is a multiple of `sub`
    blocks = (rows + tm - 1) // tm
    n_par = 2 if blocks >= 2 else 1               # v7x megacore split; no-op on 1-TC chips
    inner = (blocks + n_par - 1) // n_par
    needs_mask = (n_par * inner * tm) != rows

    def in_map(pi, ii):
        # Clamp so overflow blocks (when n_par*inner > blocks) stay in bounds;
        # they are fully masked out inside the kernel.
        return (jnp.minimum(pi * inner + ii, blocks - 1), 0)

    kernel = functools.partial(_dice_bce_kernel, tm=tm, inner_steps=inner,
                               rows=rows, needs_mask=needs_mask)

    partials = pl.pallas_call(
        kernel,
        out_shape=jax.ShapeDtypeStruct((n_par, 4), jnp.float32),
        grid_spec=pltpu.PrefetchScalarGridSpec(
            num_scalar_prefetch=0,
            grid=(n_par, inner),
            in_specs=[
                pl.BlockSpec((tm, LANE), in_map),
                pl.BlockSpec((tm, LANE), in_map),
            ],
            out_specs=pl.BlockSpec((1, 4), lambda pi, ii: (pi, 0),
                                   memory_space=pltpu.MemorySpace.SMEM),
            scratch_shapes=[pltpu.SMEM((4,), jnp.float32)],
        ),
        compiler_params=pltpu.CompilerParams(
            dimension_semantics=("parallel", "arbitrary")),
    )(x2, t2)

    # Combine per-core partials and finalize in the wrapper.
    sums = jnp.sum(partials, axis=0)
    intersection, sum_p, sum_t, bce_sum = sums[0], sums[1], sums[2], sums[3]
    dice_loss = 1.0 - (2.0 * intersection + smooth) / (sum_p + sum_t + smooth)
    return bce_sum / float(n) + dice_loss


def _reference(logits, targets, smooth=1.0):
    p = jax.nn.sigmoid(logits.reshape(-1).astype(jnp.float32))
    t = targets.reshape(-1).astype(jnp.float32)
    inter = jnp.sum(p * t)
    dice = 1.0 - (2.0 * inter + smooth) / (jnp.sum(p) + jnp.sum(t) + smooth)
    eps = 1e-12
    bce = jnp.mean(-(t * jnp.log(p + eps) + (1.0 - t) * jnp.log(1.0 - p + eps)))
    return bce + dice


if __name__ == "__main__":
    key = jax.random.PRNGKey(0)
    k1, k2 = jax.random.split(key)
    # Shapes consistent with a segmentation head: NCHW = (2, 4, 16, 16)
    logits = jax.random.normal(k1, (2, 4, 16, 16), dtype=jnp.float32)
    targets = jax.random.bernoulli(k2, 0.3, (2, 4, 16, 16)).astype(jnp.float32)

    loss = dice_bce_loss(logits, targets, smooth=1.0)
    loss = jax.block_until_ready(loss)

    ref = _reference(logits, targets, smooth=1.0)
    assert jnp.allclose(loss, ref, atol=1e-4, rtol=1e-4), (loss, ref)

    print("KERNEL_OK")
</pallas_src>

<mosaic_0001>
module attributes {stable_mosaic.version = 11 : i64} {
  func.func @_dice_bce_kernel(%arg0: i32, %arg1: i32, %arg2: memref<16x128xf32, #tpu.memory_space<vmem>>, %arg3: memref<16x128xf32, #tpu.memory_space<vmem>>, %arg4: memref<1x4xf32, #tpu.memory_space<smem>>, %arg5: memref<4xf32, #tpu.memory_space<smem>>) attributes {dimension_semantics = [#tpu.dimension_semantics<parallel>, #tpu.dimension_semantics<arbitrary>], iteration_bounds = array<i64: 1, 1>, scalar_prefetch = 0 : i64, scratch_operands = 1 : i64, tpu.core_type = #tpu.core_type<tc>, window_params = [{transform_indices = @transform_0, window_bounds = array<i64: 16, 128>}, {transform_indices = @transform_1, window_bounds = array<i64: 16, 128>}, {transform_indices = @transform_2, window_bounds = array<i64: 1, 4>}]} {
    %c0_i32 = arith.constant 0 : i32
    %0 = arith.cmpi eq, %arg1, %c0_i32 : i32
    %1 = arith.extui %0 : i1 to i32
    %c0_i32_0 = arith.constant 0 : i32
    %2 = arith.cmpi ne, %1, %c0_i32_0 : i32
    scf.if %2 {
      %cst_19 = arith.constant 0.000000e+00 : f32
      %c0_20 = arith.constant 0 : index
      %54 = memref.load %arg5[%c0_20] : memref<4xf32, #tpu.memory_space<smem>>
      memref.store %cst_19, %arg5[%c0_20] : memref<4xf32, #tpu.memory_space<smem>>
      %cst_21 = arith.constant 0.000000e+00 : f32
      %c1_22 = arith.constant 1 : index
      %55 = memref.load %arg5[%c1_22] : memref<4xf32, #tpu.memory_space<smem>>
      memref.store %cst_21, %arg5[%c1_22] : memref<4xf32, #tpu.memory_space<smem>>
      %cst_23 = arith.constant 0.000000e+00 : f32
      %c2_24 = arith.constant 2 : index
      %56 = memref.load %arg5[%c2_24] : memref<4xf32, #tpu.memory_space<smem>>
      memref.store %cst_23, %arg5[%c2_24] : memref<4xf32, #tpu.memory_space<smem>>
      %cst_25 = arith.constant 0.000000e+00 : f32
      %c3_26 = arith.constant 3 : index
      %57 = memref.load %arg5[%c3_26] : memref<4xf32, #tpu.memory_space<smem>>
      memref.store %cst_25, %arg5[%c3_26] : memref<4xf32, #tpu.memory_space<smem>>
    } else {
    }
    %c0 = arith.constant 0 : index
    %c0_1 = arith.constant 0 : index
    %3 = vector.load %arg2[%c0, %c0_1] : memref<16x128xf32, #tpu.memory_space<vmem>>, vector<16x128xf32>
    %c0_2 = arith.constant 0 : index
    %c0_3 = arith.constant 0 : index
    %4 = vector.load %arg3[%c0_2, %c0_3] : memref<16x128xf32, #tpu.memory_space<vmem>>, vector<16x128xf32>
    %5 = math.absf %3 : vector<16x128xf32>
    %cst = arith.constant 0.000000e+00 : f32
    %6 = vector.broadcast %cst : f32 to vector<16x128xf32>
    %7 = arith.subf %6, %5 : vector<16x128xf32>
    %8 = math.exp %7 : vector<16x128xf32>
    %cst_4 = arith.constant 0.000000e+00 : f32
    %9 = vector.broadcast %cst_4 : f32 to vector<16x128xf32>
    %10 = arith.cmpf oge, %3, %9 : vector<16x128xf32>
    %cst_5 = arith.constant 1.000000e+00 : f32
    %11 = vector.broadcast %cst_5 : f32 to vector<16x128xf32>
    %12 = arith.select %10, %11, %8 : vector<16x128xi1>, vector<16x128xf32>
    %cst_6 = arith.constant 1.000000e+00 : f32
    %13 = vector.broadcast %cst_6 : f32 to vector<16x128xf32>
    %14 = arith.addf %13, %8 : vector<16x128xf32>
    %15 = arith.divf %12, %14 : vector<16x128xf32>
    %cst_7 = arith.constant 0.000000e+00 : f32
    %16 = vector.broadcast %cst_7 : f32 to vector<16x128xf32>
    %17 = arith.maximumf %3, %16 : vector<16x128xf32>
    %18 = arith.mulf %3, %4 : vector<16x128xf32>
    %19 = arith.subf %17, %18 : vector<16x128xf32>
    %20 = math.log1p %8 : vector<16x128xf32>
    %21 = arith.addf %19, %20 : vector<16x128xf32>
    %c0_8 = arith.constant 0 : index
    %22 = memref.load %arg5[%c0_8] : memref<4xf32, #tpu.memory_space<smem>>
    %23 = arith.mulf %15, %4 : vector<16x128xf32>
    %24 = vector.shape_cast %23 : vector<16x128xf32> to vector<1x16x128xf32>
    %cst_9 = arith.constant dense<0.000000e+00> : vector<1xf32>
    %25 = vector.multi_reduction <add>, %24, %cst_9 [1, 2] : vector<1x16x128xf32> to vector<1xf32>
    %26 = vector.shape_cast %25 : vector<1xf32> to vector<1x1x1xf32>
    %27 = vector.extract %26[0, 0, 0] : f32 from vector<1x1x1xf32>
    %28 = arith.addf %22, %27 : f32
    %c0_10 = arith.constant 0 : index
    %29 = memref.load %arg5[%c0_10] : memref<4xf32, #tpu.memory_space<smem>>
    memref.store %28, %arg5[%c0_10] : memref<4xf32, #tpu.memory_space<smem>>
    %c1 = arith.constant 1 : index
    %30 = memref.load %arg5[%c1] : memref<4xf32, #tpu.memory_space<smem>>
    %31 = vector.shape_cast %15 : vector<16x128xf32> to vector<1x16x128xf32>
    %cst_11 = arith.constant dense<0.000000e+00> : vector<1xf32>
    %32 = vector.multi_reduction <add>, %31, %cst_11 [1, 2] : vector<1x16x128xf32> to vector<1xf32>
    %33 = vector.shape_cast %32 : vector<1xf32> to vector<1x1x1xf32>
    %34 = vector.extract %33[0, 0, 0] : f32 from vector<1x1x1xf32>
    %35 = arith.addf %30, %34 : f32
    %c1_12 = arith.constant 1 : index
    %36 = memref.load %arg5[%c1_12] : memref<4xf32, #tpu.memory_space<smem>>
    memref.store %35, %arg5[%c1_12] : memref<4xf32, #tpu.memory_space<smem>>
    %c2 = arith.constant 2 : index
    %37 = memref.load %arg5[%c2] : memref<4xf32, #tpu.memory_space<smem>>
    %38 = vector.shape_cast %4 : vector<16x128xf32> to vector<1x16x128xf32>
    %cst_13 = arith.constant dense<0.000000e+00> : vector<1xf32>
    %39 = vector.multi_reduction <add>, %38, %cst_13 [1, 2] : vector<1x16x128xf32> to vector<1xf32>
    %40 = vector.shape_cast %39 : vector<1xf32> to vector<1x1x1xf32>
    %41 = vector.extract %40[0, 0, 0] : f32 from vector<1x1x1xf32>
    %42 = arith.addf %37, %41 : f32
    %c2_14 = arith.constant 2 : index
    %43 = memref.load %arg5[%c2_14] : memref<4xf32, #tpu.memory_space<smem>>
    memref.store %42, %arg5[%c2_14] : memref<4xf32, #tpu.memory_space<smem>>
    %c3 = arith.constant 3 : index
    %44 = memref.load %arg5[%c3] : memref<4xf32, #tpu.memory_space<smem>>
    %45 = vector.shape_cast %21 : vector<16x128xf32> to vector<1x16x128xf32>
    %cst_15 = arith.constant dense<0.000000e+00> : vector<1xf32>
    %46 = vector.multi_reduction <add>, %45, %cst_15 [1, 2] : vector<1x16x128xf32> to vector<1xf32>
    %47 = vector.shape_cast %46 : vector<1xf32> to vector<1x1x1xf32>
    %48 = vector.extract %47[0, 0, 0] : f32 from vector<1x1x1xf32>
    %49 = arith.addf %44, %48 : f32
    %c3_16 = arith.constant 3 : index
    %50 = memref.load %arg5[%c3_16] : memref<4xf32, #tpu.memory_space<smem>>
    memref.store %49, %arg5[%c3_16] : memref<4xf32, #tpu.memory_space<smem>>
    %c0_i32_17 = arith.constant 0 : i32
    %51 = arith.cmpi eq, %arg1, %c0_i32_17 : i32
    %52 = arith.extui %51 : i1 to i32
    %c0_i32_18 = arith.constant 0 : i32
    %53 = arith.cmpi ne, %52, %c0_i32_18 : i32
    scf.if %53 {
      %c0_19 = arith.constant 0 : index
      %54 = memref.load %arg5[%c0_19] : memref<4xf32, #tpu.memory_space<smem>>
      %c0_20 = arith.constant 0 : index
      %c0_21 = arith.constant 0 : index
      %55 = memref.load %arg4[%c0_20, %c0_21] : memref<1x4xf32, #tpu.memory_space<smem>>
      memref.store %54, %arg4[%c0_20, %c0_21] : memref<1x4xf32, #tpu.memory_space<smem>>
      %c1_22 = arith.constant 1 : index
      %56 = memref.load %arg5[%c1_22] : memref<4xf32, #tpu.memory_space<smem>>
      %c0_23 = arith.constant 0 : index
      %c1_24 = arith.constant 1 : index
      %57 = memref.load %arg4[%c0_23, %c1_24] : memref<1x4xf32, #tpu.memory_space<smem>>
      memref.store %56, %arg4[%c0_23, %c1_24] : memref<1x4xf32, #tpu.memory_space<smem>>
      %c2_25 = arith.constant 2 : index
      %58 = memref.load %arg5[%c2_25] : memref<4xf32, #tpu.memory_space<smem>>
      %c0_26 = arith.constant 0 : index
      %c2_27 = arith.constant 2 : index
      %59 = memref.load %arg4[%c0_26, %c2_27] : memref<1x4xf32, #tpu.memory_space<smem>>
      memref.store %58, %arg4[%c0_26, %c2_27] : memref<1x4xf32, #tpu.memory_space<smem>>
      %c3_28 = arith.constant 3 : index
      %60 = memref.load %arg5[%c3_28] : memref<4xf32, #tpu.memory_space<smem>>
      %c0_29 = arith.constant 0 : index
      %c3_30 = arith.constant 3 : index
      %61 = memref.load %arg4[%c0_29, %c3_30] : memref<1x4xf32, #tpu.memory_space<smem>>
      memref.store %60, %arg4[%c0_29, %c3_30] : memref<1x4xf32, #tpu.memory_space<smem>>
    } else {
    }
    return
  }
  func.func @transform_0(%arg0: i32, %arg1: i32) -> (i32, i32) {
    %c1_i32 = arith.constant 1 : i32
    %0 = arith.muli %arg0, %c1_i32 : i32
    %1 = arith.addi %0, %arg1 : i32
    %c0_i32 = arith.constant 0 : i32
    %2 = arith.minsi %1, %c0_i32 : i32
    %c0_i32_0 = arith.constant 0 : i32
    %c0_i32_1 = arith.constant 0 : i32
    return %2, %c0_i32_0 : i32, i32
  }
  func.func @transform_1(%arg0: i32, %arg1: i32) -> (i32, i32) {
    %c1_i32 = arith.constant 1 : i32
    %0 = arith.muli %arg0, %c1_i32 : i32
    %1 = arith.addi %0, %arg1 : i32
    %c0_i32 = arith.constant 0 : i32
    %2 = arith.minsi %1, %c0_i32 : i32
    %c0_i32_0 = arith.constant 0 : i32
    %c0_i32_1 = arith.constant 0 : i32
    return %2, %c0_i32_0 : i32, i32
  }
  func.func @transform_2(%arg0: i32, %arg1: i32) -> (i32, i32) {
    %c0_i32 = arith.constant 0 : i32
    %c0_i32_0 = arith.constant 0 : i32
    return %arg0, %c0_i32 : i32, i32
  }
}

</mosaic_0001>

<llo_original>
// kernel: tpu_custom_call.1
$region0: #{tpu_custom_call.1}
  #allocation0 [shape = 'u32[]', space=smem, size = 0x4, offset = 0x4, fixed_abs, tag = 'smem constant byte address 0x4 - core index']
  #allocation1 [shape = 'u32[144,128]{1,0:T(1,128)}', space=vmem, size = 0x12000, scoped, tag = 'internal scratch']
  #allocation2 [shape = 'f32[4]{0:T(128)}', space=smem, size = 0x200, scoped, tag = 'scratch operand']
  %s0 = inlined_call_operand.hbm [shape: f32[16,128], index: 0, kind: input, shape index: {}]
  %s1 = inlined_call_operand.hbm [shape: f32[16,128], index: 1, kind: input, shape index: {}]
  %s2 = inlined_call_operand.hbm [shape: f32[1,4], index: 2, kind: output, shape index: {}]
  %s3 = sld [smem:[#allocation0]]
  $region34: #{tpu_custom_call.1} parent=0
    _
  %s5 = ssub.s32 1, %s3
  %s6 = scalar_select 0, %s5, %s3
  $region1: #{tpu_custom_call.1} parent=0
    #allocation3 [shape = 'u8[8192]{0}', space=vmem, size = 0x2000, scoped, tag = 'input window, operand 0, single buffered']
    #allocation4 [shape = 's32[1]{0}', space=sflag, size = 0x4, scoped, tag = 'scoped memory for tpu_custom_call.1']
    #allocation5 [shape = 's32[1]{0}', space=sflag, size = 0x4, scoped, tag = 'scoped memory for tpu_custom_call.1']
    #allocation6 [shape = 'u8[8192]{0}', space=vmem, size = 0x2000, scoped, tag = 'input window, operand 1, single buffered']
    #allocation7 [shape = 's32[1]{0}', space=sflag, size = 0x4, scoped, tag = 'scoped memory for tpu_custom_call.1']
    #allocation8 [shape = 'u8[512]{0}', space=smem, size = 0x200, scoped, tag = 'output window, operand 0, single buffered']
    %7 = vsyncpa [#allocation4], 0
    %8 = vsyncpa [#allocation7], 0
    %9 = vsyncpa [#allocation5], 0
    // Predicated region
    $region2: #{tpu_custom_call.1} parent=1 // pred_check
      _
    $region3: #{tpu_custom_call.1} parent=1 // pred_check_branch
      %11 = sbr.rel (0) target = $region5
    $region4: #{tpu_custom_call.1} parent=1 // pred_region
      %s12 = sadd.s32 0, 0
      %p13 = scmp.lt.s32.totalorder %s12, 0
      %s14 = scalar_select %p13, %s12, 0
      %s15 = smul.u32 2, %s14
      %s17 = ssub.s32 256, 256
      %18 = vsyncadd [#allocation4], %s17
      %s19 = smul.addr %s15, 128
      %s20 = scalar_lea.hbm %s0, %s19
      %s21 = sshll.u32 [#allocation3], 4
      %s22 = int_to_ptr.vmem [resolvable:$true] %s21
      %27 = dma.hbm_to_vmem [thread:$0]  %s20, 256, %s22, [#allocation4], 128, 128, 8
    $region5: #{tpu_custom_call.1} parent=1 // pred_fallthru
      _
    // Predicated region
    $region6: #{tpu_custom_call.1} parent=1 // pred_check
      _
    $region7: #{tpu_custom_call.1} parent=1 // pred_check_branch
      %29 = sbr.rel (0) target = $region9
    $region8: #{tpu_custom_call.1} parent=1 // pred_region
      %s30 = sadd.s32 0, 0
      %p31 = scmp.lt.s32.totalorder %s30, 0
      %s32 = scalar_select %p31, %s30, 0
      %s33 = smul.u32 2, %s32
      %s35 = ssub.s32 256, 256
      %36 = vsyncadd [#allocation7], %s35
      %s37 = smul.addr %s33, 128
      %s38 = scalar_lea.hbm %s1, %s37
      %s39 = sshll.u32 [#allocation6], 4
      %s40 = int_to_ptr.vmem [resolvable:$true] %s39
      %45 = dma.hbm_to_vmem [thread:$0]  %s38, 256, %s40, [#allocation7], 128, 128, 8
    $region9: #{tpu_custom_call.1} parent=1 // pred_fallthru
      _
    // Predicated region
    $region10: #{tpu_custom_call.1} parent=1 // pred_check
      _
    $region11: #{tpu_custom_call.1} parent=1 // pred_check_branch
      %47 = sbr.rel (0) target = $region13
    $region12: #{tpu_custom_call.1} parent=1 // pred_region
      %48 = dma.done [#allocation4], 256
    $region13: #{tpu_custom_call.1} parent=1 // pred_fallthru
      _
    // Predicated region
    $region14: #{tpu_custom_call.1} parent=1 // pred_check
      _
    $region15: #{tpu_custom_call.1} parent=1 // pred_check_branch
      %50 = sbr.rel (0) target = $region17
    $region16: #{tpu_custom_call.1} parent=1 // pred_region
      %51 = dma.done [#allocation7], 256
    $region17: #{tpu_custom_call.1} parent=1 // pred_fallthru
      _
    %s52 = sadd.s32 0, 0
    %p53 = scmp.lt.s32.totalorder %s52, 0
    %s54 = scalar_select %p53, %s52, 0
    %s55 = smul.u32 2, %s54
    %s56 = sadd.s32 0, 0
    %p57 = scmp.lt.s32.totalorder %s56, 0
    %s58 = scalar_select %p57, %s56, 0
    %s59 = smul.u32 2, %s58
    %p60 = scmp.eq.s32.totalorder 0, 0
    // Predicated region
    $region18: #{tpu_custom_call.1} parent=1 // pred_check
      %p61 = pneg %p60
    $region19: #{tpu_custom_call.1} parent=1 // pred_check_branch
      %63 = sbr.rel (%p61) target = $region21
    $region20: #{tpu_custom_call.1} parent=1 // pred_region
      %s64 = scalar_lea.smem [#allocation2], 0
      %65 = sst [smem:[%s64]] 0.0
      %s66 = scalar_lea.smem [#allocation2], 1
      %67 = sst [smem:[%s66]] 0.0
      %s68 = scalar_lea.smem [#allocation2], 2
      %69 = sst [smem:[%s68]] 0.0
      %s70 = scalar_lea.smem [#allocation2], 3
      %71 = sst [smem:[%s70]] 0.0
    $region21: #{tpu_custom_call.1} parent=1 // pred_fallthru
      _
    %v72 = vld [vmem:[#allocation3] sm:$0xff]
    %v73 = vld [vmem:[#allocation3 + $0x8] sm:$0xff]
    %v74 = vld [vmem:[#allocation6] sm:$0xff]
    %v75 = vld [vmem:[#allocation6 + $0x8] sm:$0xff]
    %v76 = vand.u32 2147483647, %v72
    %v77 = vand.u32 2147483647, %v73
    %v78 = vsub.f32 0.0, %v76
    %v79 = vsub.f32 0.0, %v77
    %v80 = vmul.f32 %v78, 1.442695
    %v81 = vpow.pop %v80
    %v82 = vmul.f32 %v79, 1.442695
    %v83 = vpow.pop %v82
    %vm84 = vcmp.ge.f32.partialorder %v72, 0.0
    %vm85 = vcmp.ge.f32.partialorder %v73, 0.0
    %v86 = vsel %vm84, 1.0, %v81
    %v87 = vsel %vm85, 1.0, %v83
    %v88 = vadd.f32 %v81, 1.0
    %v89 = vadd.f32 %v83, 1.0
    %v90 = vrcp.pop %v88
    %v91 = vmul.f32 %v86, %v90
    %v92 = vrcp.pop %v89
    %v93 = vmul.f32 %v87, %v92
    %v94 = vmax.f32 %v72, 0.0
    %v95 = vmax.f32 %v73, 0.0
    %v96 = vmul.f32 %v72, %v74
    %v97 = vmul.f32 %v73, %v75
    %v98 = vsub.f32 %v94, %v96
    %v99 = vsub.f32 %v95, %v97
    %v100 = vadd.f32 %v81, 1.0
    %v101 = vlog2.pop %v100
    %v102 = vmul.f32 %v101, 0.6931472
    %v103 = vmul.f32 -0.5, %v81
    %v104 = vadd.f32 %v103, 1.0
    %v105 = vmul.f32 %v104, %v81
    %v106 = vand.u32 2147483647, %v81
    %vm107 = vcmp.lt.f32.partialorder %v106, 0.0004427343
    %v108 = vsel %vm107, %v105, %v102
    %v109 = vadd.f32 %v83, 1.0
    %v110 = vlog2.pop %v109
    %v111 = vmul.f32 %v110, 0.6931472
    %v112 = vmul.f32 -0.5, %v83
    %v113 = vadd.f32 %v112, 1.0
    %v114 = vmul.f32 %v113, %v83
    %v115 = vand.u32 2147483647, %v83
    %vm116 = vcmp.lt.f32.partialorder %v115, 0.0004427343
    %v117 = vsel %vm116, %v114, %v111
    %v118 = vadd.f32 %v98, %v108
    %v119 = vadd.f32 %v99, %v117
    %s120 = sld [smem:[#allocation2]]
    %v121 = vmul.f32 %v91, %v74
    %v122 = vmul.f32 %v93, %v75
    %v123 = vadd.f32 %v121, %v122
    %124 = vadd.xlane.f32.xlu0 %v123
    %v125 = vpop.xlane.xlu0 %124
    %v126 = vrot.slane %v125, 4
    %v127 = vadd.f32 %v125, %v126
    %v128 = vrot.slane %v127, 2
    %v129 = vadd.f32 %v127, %v128
    %v130 = vrot.slane %v129, 1
    %v131 = vadd.f32 %v129, %v130
    %s132 = vtos %v131
    %s133 = sadd.f32 %s120, %s132
    %s134 = scalar_lea.smem [#allocation2], 0
    %135 = sst [smem:[%s134]] %s133
    %s136 = sld [smem:[#allocation2 + $0x1]]
    %v137 = vadd.f32 %v91, %v93
    %138 = vadd.xlane.f32.xlu0 %v137
    %v139 = vpop.xlane.xlu0 %138
    %v140 = vrot.slane %v139, 4
    %v141 = vadd.f32 %v139, %v140
    %v142 = vrot.slane %v141, 2
    %v143 = vadd.f32 %v141, %v142
    %v144 = vrot.slane %v143, 1
    %v145 = vadd.f32 %v143, %v144
    %s146 = vtos %v145
    %s147 = sadd.f32 %s136, %s146
    %s148 = scalar_lea.smem [#allocation2], 1
    %149 = sst [smem:[%s148]] %s147
    %s150 = sld [smem:[#allocation2 + $0x2]]
    %v151 = vadd.f32 %v74, %v75
    %152 = vadd.xlane.f32.xlu0 %v151
    %v153 = vpop.xlane.xlu0 %152
    %v154 = vrot.slane %v153, 4
    %v155 = vadd.f32 %v153, %v154
    %v156 = vrot.slane %v155, 2
    %v157 = vadd.f32 %v155, %v156
    %v158 = vrot.slane %v157, 1
    %v159 = vadd.f32 %v157, %v158
    %s160 = vtos %v159
    %s161 = sadd.f32 %s150, %s160
    %s162 = scalar_lea.smem [#allocation2], 2
    %163 = sst [smem:[%s162]] %s161
    %s164 = sld [smem:[#allocation2 + $0x3]]
    %v165 = vadd.f32 %v118, %v119
    %166 = vadd.xlane.f32.xlu0 %v165
    %v167 = vpop.xlane.xlu0 %166
    %v168 = vrot.slane %v167, 4
    %v169 = vadd.f32 %v167, %v168
    %v170 = vrot.slane %v169, 2
    %v171 = vadd.f32 %v169, %v170
    %v172 = vrot.slane %v171, 1
    %v173 = vadd.f32 %v171, %v172
    %s174 = vtos %v173
    %s175 = sadd.f32 %s164, %s174
    %s176 = scalar_lea.smem [#allocation2], 3
    %177 = sst [smem:[%s176]] %s175
    // Predicated region
    $region22: #{tpu_custom_call.1} parent=1 // pred_check
      %p178 = pneg %p60
    $region23: #{tpu_custom_call.1} parent=1 // pred_check_branch
      %180 = sbr.rel (%p178) target = $region25
    $region24: #{tpu_custom_call.1} parent=1 // pred_region
      %s181 = sld [smem:[#allocation2]]
      %s182 = scalar_lea.smem [#allocation8], 0
      %183 = sst [smem:[%s182]] %s181
      %s184 = sld [smem:[#allocation2 + $0x1]]
      %s185 = scalar_lea.smem [#allocation8], 1
      %186 = sst [smem:[%s185]] %s184
      %s187 = sld [smem:[#allocation2 + $0x2]]
      %s188 = scalar_lea.smem [#allocation8], 2
      %189 = sst [smem:[%s188]] %s187
      %s190 = sld [smem:[#allocation2 + $0x3]]
      %s191 = scalar_lea.smem [#allocation8], 3
      %192 = sst [smem:[%s191]] %s190
    $region25: #{tpu_custom_call.1} parent=1 // pred_fallthru
      _
    // Predicated region
    $region26: #{tpu_custom_call.1} parent=1 // pred_check
      _
    $region27: #{tpu_custom_call.1} parent=1 // pred_check_branch
      %194 = sbr.rel (0) target = $region29
    $region28: #{tpu_custom_call.1} parent=1 // pred_region
      %s196 = ssub.s32 16, 16
      %197 = vsyncadd [#allocation5], %s196
      %200 = dma.smem_to_hbm [#allocation8], 16, %s2, [#allocation5]
    $region29: #{tpu_custom_call.1} parent=1 // pred_fallthru
      _
    // Predicated region
    $region30: #{tpu_custom_call.1} parent=1 // pred_check
      _
    $region31: #{tpu_custom_call.1} parent=1 // pred_check_branch
      %202 = sbr.rel (0) target = $region33
    $region32: #{tpu_custom_call.1} parent=1 // pred_region
      %203 = dma.done [#allocation5], 16
    $region33: #{tpu_custom_call.1} parent=1 // pred_fallthru
      _
    %204 = sfence
    %205 = vsyncpa [#allocation4], 1
    %206 = vsyncpa [#allocation7], 1
    %207 = vsyncpa [#allocation5], 1

</llo_original>
